<compile_context>
chip_gen: v5e
topology: v5e:2x2
jax: 0.10.0
libtpu: 0.0.40
codegen_flags: <defaults>
</compile_context>

<pallas_src>
import jax
import jax.numpy as jnp
from jax.experimental import pallas as pl
from jax.experimental.pallas import tpu as pltpu


# ----------------------------- kernel ----------------------------------------

def _hbm_copy_kernel(x_hbm_ref, o_hbm_ref):
    # Whole-array HBM -> HBM DMA (no VMEM round trip).
    def body(sem):
        copy = pltpu.make_async_copy(x_hbm_ref, o_hbm_ref, sem)
        copy.start()
        copy.wait()

    pl.run_scoped(body, pltpu.SemaphoreType.DMA)


# ----------------------------- wrappers ---------------------------------------

def decoder_forward(x, state=None):
    """True module semantics: forward is the identity.  Move zero bytes."""
    return x


def decoder_forward_pallas(x, state=None, *, interpret=False):
    """Materialize a fresh buffer equal to x via one HBM->HBM DMA.

    Use only when a distinct output allocation is actually required; the
    zero-cost path is `decoder_forward`, which returns x unchanged.
    `state` is accepted (and ignored) to mirror the PyTorch signature.
    """
    nbytes = x.size * jnp.dtype(x.dtype).itemsize
    return pl.pallas_call(
        _hbm_copy_kernel,
        out_shape=jax.ShapeDtypeStruct(x.shape, x.dtype),
        in_specs=[pl.BlockSpec(memory_space=pl.ANY)],
        out_specs=pl.BlockSpec(memory_space=pl.ANY),
        cost_estimate=pl.CostEstimate(
            flops=0, transcendentals=0, bytes_accessed=2 * nbytes),
        interpret=interpret,
    )(x)


# ----------------------------- main -------------------------------------------

if __name__ == "__main__":
    # Shapes consistent with a (batch, seq, hidden) decoder input.
    B, L, D = 2, 8, 32
    key = jax.random.PRNGKey(0)
    x = jax.random.normal(key, (B, L, D), jnp.float32)

    ok = True

    # Zero-copy identity path (the real forward).
    y = decoder_forward(x)
    if not (y.shape == x.shape and y.dtype == x.dtype and jnp.array_equal(y, x)):
        ok = False
        print("identity (return-x) path mismatch")

    # Pallas HBM->HBM DMA copy path, f32 and bf16 (dtype must be preserved).
    for dt in (jnp.float32, jnp.bfloat16):
        xi = x.astype(dt)
        out = jax.block_until_ready(decoder_forward_pallas(xi))
        if out.shape != xi.shape or out.dtype != xi.dtype:
            ok = False
            print(f"dtype={dt}: shape/dtype mismatch {out.shape} {out.dtype}")
        elif not jnp.array_equal(out, xi):
            ok = False
            err = float(jnp.max(jnp.abs(out.astype(jnp.float32)
                                        - xi.astype(jnp.float32))))
            print(f"dtype={dt}: value mismatch, max abs err {err}")

    # A longer sequence to exercise a larger single-DMA copy.
    L2 = 4096
    x2 = jax.random.normal(jax.random.PRNGKey(1), (B, L2, D), jnp.float32)
    out2 = jax.block_until_ready(decoder_forward_pallas(x2))
    if not jnp.array_equal(out2, x2):
        ok = False
        print("long-sequence DMA copy mismatch")

    if ok:
        print("KERNEL_OK")
</pallas_src>

<mosaic_0001>
module attributes {stable_mosaic.version = 11 : i64} {
  func.func @_hbm_copy_kernel(%arg0: memref<2x8x32xf32, #tpu.memory_space<any>>, %arg1: memref<2x8x32xf32, #tpu.memory_space<any>>) attributes {dimension_semantics = [], scalar_prefetch = 0 : i64, scratch_operands = 0 : i64, tpu.core_type = #tpu.core_type<tc>} {
    "tpu.region"() ({
      %0 = tpu.sem_alloc : memref<!tpu.dma_semaphore, #tpu.memory_space<semaphore_mem>>
      tpu.enqueue_dma source(%arg0 : memref<2x8x32xf32, #tpu.memory_space<any>>) target(%arg1 : memref<2x8x32xf32, #tpu.memory_space<any>>) target_semaphore(%0 : memref<!tpu.dma_semaphore, #tpu.memory_space<semaphore_mem>>)
      tpu.wait_dma2 semaphore(%0 : memref<!tpu.dma_semaphore, #tpu.memory_space<semaphore_mem>>) src(%arg0 : memref<2x8x32xf32, #tpu.memory_space<any>>) dst(%arg1 : memref<2x8x32xf32, #tpu.memory_space<any>>)
      tpu.yield
    }) : () -> ()
    return
  }
}

</mosaic_0001>

<llo_original>
// kernel: tpu_custom_call.1
$region0: #{tpu_custom_call.1}
  #allocation0 [shape = 'u32[]', space=smem, size = 0x4, offset = 0x4, fixed_abs, tag = 'smem constant byte address 0x4 - core index']
  #allocation1 [shape = 'u32[72,128]{1,0:T(1,128)}', space=vmem, size = 0x9000, scoped, tag = 'internal scratch']
  #allocation3 [shape = 's32[]', space=sflag, size = 0x4, offset = 0, fixed_abs, tag = 'sflag constant byte address 0x0 - dummy sync flag']
  #allocation4 [shape = 'u32[0]{0}', space=smem, size = 0, offset = 0, fixed_abs, tag = 'smem constant byte address 0x0 - null']
  %s0 = inlined_call_operand.hbm [shape: f32[2,8,32], index: 0, kind: input, shape index: {}]
  %s1 = inlined_call_operand.hbm [shape: f32[2,8,32], index: 1, kind: output, shape index: {}]
  %s2 = sld [smem:[#allocation0]]
  $region3: #{tpu_custom_call.1} parent=0
    _
  %s4 = ssub.s32 1, %s2
  %s5 = scalar_select 0, %s4, %s2
  $region2: #{tpu_custom_call.1} parent=0
    #allocation2 [shape = 's32[1]{0}', space=sflag, size = 0x4, scoped, tag = 'scoped memory for tpu_custom_call.1']
    %s7 = sshll.u32 1, 14
    %s8 = sxor.u32 4294967295, %s7
    %s10 = sshll.u32 %s0, 4
    %s11 = int_to_ptr.hbm [resolvable:$true] %s10
    %s12 = sshll.u32 %s1, 4
    %s13 = int_to_ptr.hbm [resolvable:$true] %s12
    %16 = dma.general %s11, 256, %s13, [#allocation2], [#allocation3], [#allocation4], 0, 0
    %s17 = smul.u32 2, 8
    %s18 = smul.u32 %s17, 1
    %s19 = sshll.u32 %s18, 4
    %20 = dma.done [#allocation2], %s19

</llo_original>
